<compile_context>
chip_gen: v7x
topology: tpu7x:2x2x1
jax: 0.10.0
libtpu: 0.0.40
codegen_flags: <defaults>
</compile_context>

<pallas_src>
import functools

import jax
import jax.numpy as jnp
from jax import lax
from jax.experimental import pallas as pl
from jax.experimental.pallas import tpu as pltpu


def _round_up(x, m):
    return ((x + m - 1) // m) * m


def _embedding_dropout_kernel(seed_ref, ids_ref, emb_ref, out_ref, *,
                              vocab_size, tile_n, apply_dropout,
                              keep_threshold, keep_scale):
    """One grid step per tile of TILE_N tokens.

    seed_ref : SMEM (1,) int32        -- scalar-prefetched dropout seed
    ids_ref  : VMEM (TILE_N, 1) int32 -- token ids for this tile (column vector)
    emb_ref  : VMEM (V, D) f32        -- full embedding table (resident)
    out_ref  : VMEM (TILE_N, D) f32   -- gathered (+ dropout-ed) embeddings
    """
    i = pl.program_id(0)
    d = out_ref.shape[-1]

    # --- vectorized gather: one-hot (TILE_N, V) x table (V, D) on the MXU ----
    ids = ids_ref[...]                                            # (TILE_N, 1)
    iota_v = lax.broadcasted_iota(jnp.int32, (tile_n, vocab_size), 1)
    one_hot = (ids == iota_v).astype(emb_ref.dtype)               # (TILE_N, V)
    # Note: out-of-range ids produce an all-zero one-hot row (safe, no OOB read).
    gathered = jnp.dot(one_hot, emb_ref[...],
                       preferred_element_type=jnp.float32)        # (TILE_N, D)

    # --- fused dropout (training mode): zero w.p. p, scale kept by 1/(1-p) ---
    if apply_dropout:
        seed_u = seed_ref[0].astype(jnp.uint32)
        row = lax.broadcasted_iota(jnp.int32, (tile_n, d), 0) + i * tile_n
        col = lax.broadcasted_iota(jnp.int32, (tile_n, d), 1)
        # Counter-based hash PRNG (murmur3 fmix32 style): pure VPU integer ops,
        # portable (TPU + interpret), deterministic per (seed, global position).
        x = (row * d + col).astype(jnp.uint32)
        x = x + seed_u * jnp.uint32(0x9E3779B9)
        x = x ^ (x >> jnp.uint32(16))
        x = x * jnp.uint32(0x85EBCA6B)
        x = x ^ (x >> jnp.uint32(13))
        x = x * jnp.uint32(0xC2B2AE35)
        x = x ^ (x >> jnp.uint32(16))
        keep = x >= jnp.uint32(keep_threshold)     # P(keep) = 1 - p
        gathered = jnp.where(keep, gathered * jnp.float32(keep_scale),
                             jnp.float32(0.0))

    out_ref[...] = gathered.astype(out_ref.dtype)


def embedding_layer_forward(input_vec, emb_table, *, dropout_rate=0.0,
                            training=True, seed=0):
    """Pallas equivalent of EmbeddingLayer.forward (embedding lookup + dropout)."""
    B, S = input_vec.shape
    V, D = emb_table.shape
    N = B * S
    p = float(dropout_rate) if training else 0.0

    # Token-tile size: single lane-dense block at toy sizes, 256-row tiles for
    # larger problems (keeps the MXU M dimension reasonably filled).
    tile_n = 256 if N >= 256 else _round_up(N, 8)
    n_pad = _round_up(N, tile_n)

    ids = input_vec.astype(jnp.int32).reshape(N)
    if n_pad != N:
        ids = jnp.pad(ids, (0, n_pad - N))
    ids_col = ids.reshape(n_pad, 1)

    apply_dropout = p > 0.0
    keep_threshold = min(int(round(p * float(2 ** 32))), 2 ** 32 - 1)
    keep_scale = 1.0 / (1.0 - p) if apply_dropout else 1.0

    kernel = functools.partial(
        _embedding_dropout_kernel,
        vocab_size=V, tile_n=tile_n, apply_dropout=apply_dropout,
        keep_threshold=keep_threshold, keep_scale=keep_scale)

    seed_arr = jnp.asarray([seed], dtype=jnp.int32)

    grid_spec = pltpu.PrefetchScalarGridSpec(
        num_scalar_prefetch=1,                        # seed -> SMEM
        grid=(n_pad // tile_n,),
        in_specs=[
            pl.BlockSpec((tile_n, 1), lambda i, seed_ref: (i, 0)),   # token ids
            pl.BlockSpec((V, D), lambda i, seed_ref: (0, 0)),        # full table
        ],
        out_specs=pl.BlockSpec((tile_n, D), lambda i, seed_ref: (i, 0)),
    )

    out_flat = pl.pallas_call(
        kernel,
        out_shape=jax.ShapeDtypeStruct((n_pad, D), emb_table.dtype),
        grid_spec=grid_spec,
        compiler_params=pltpu.CompilerParams(
            dimension_semantics=("parallel",)),       # rows independent (v7x 2xTC)
    )(seed_arr, ids_col, emb_table)

    return out_flat[:N].reshape(B, S, D)


def embedding_layer_reference(input_vec, emb_table):
    # dropout-free reference (gather only)
    return jnp.take(emb_table, input_vec, axis=0)


if __name__ == "__main__":
    # Module hyper-params (small, consistent with EmbeddingLayer.__init__)
    input_dim = 128          # embedding dimension D
    full_dict_size = 64      # vocabulary size V
    embedding_dropout_rate = 0.1

    B, S = 2, 8

    key = jax.random.PRNGKey(0)
    k_emb, k_ids = jax.random.split(key)

    # nn.Embedding default init: N(0, 1)
    word_embedding = jax.random.normal(
        k_emb, (full_dict_size, input_dim), dtype=jnp.float32)
    input_vec = jax.random.randint(
        k_ids, (B, S), minval=0, maxval=full_dict_size, dtype=jnp.int32)

    # 1) Correctness of the gather path with dropout disabled (exact match).
    out_nodrop = embedding_layer_forward(
        input_vec, word_embedding, dropout_rate=0.0, training=False)
    ref = embedding_layer_reference(input_vec, word_embedding)
    jax.block_until_ready(out_nodrop)
    assert out_nodrop.shape == (B, S, input_dim)
    assert jnp.allclose(out_nodrop, ref, atol=1e-6), "gather mismatch"

    # 2) Training-mode forward (embedding + dropout), as in the PyTorch module.
    out = embedding_layer_forward(
        input_vec, word_embedding,
        dropout_rate=embedding_dropout_rate, training=True, seed=1234)
    out = jax.block_until_ready(out)
    assert out.shape == (B, S, input_dim)
    # Every element is either dropped (0) or the reference value scaled by 1/(1-p).
    scale = 1.0 / (1.0 - embedding_dropout_rate)
    consistent = jnp.isclose(out, 0.0, atol=1e-6) | jnp.isclose(
        out, ref * scale, rtol=1e-5, atol=1e-5)
    assert bool(jnp.all(consistent)), "dropout output inconsistent with gather"

    print("KERNEL_OK")
</pallas_src>

<mosaic_0001>
module attributes {stable_mosaic.version = 11 : i64} {
  func.func @_embedding_dropout_kernel(%arg0: i32, %arg1: memref<1xi32, #tpu.memory_space<smem>>, %arg2: memref<16x1xi32, #tpu.memory_space<vmem>>, %arg3: memref<64x128xf32, #tpu.memory_space<vmem>>, %arg4: memref<16x128xf32, #tpu.memory_space<vmem>>) attributes {dimension_semantics = [#tpu.dimension_semantics<parallel>], iteration_bounds = array<i64: 1>, scalar_prefetch = 1 : i64, scratch_operands = 0 : i64, tpu.core_type = #tpu.core_type<tc>, window_params = [{transform_indices = @transform_0, window_bounds = array<i64: 16, 1>}, {pipeline_mode = #tpu.pipeline_mode<synchronous>, transform_indices = @transform_1, window_bounds = array<i64: 64, 128>}, {transform_indices = @transform_2, window_bounds = array<i64: 16, 128>}]} {
    %c0 = arith.constant 0 : index
    %c0_0 = arith.constant 0 : index
    %0 = vector.load %arg2[%c0, %c0_0] : memref<16x1xi32, #tpu.memory_space<vmem>>, vector<16x1xi32>
    %1 = tpu.iota {dimensions = array<i32: 1>} : vector<16x64xi32>
    %2 = vector.broadcast %0 : vector<16x1xi32> to vector<16x64xi32>
    %3 = arith.cmpi eq, %2, %1 : vector<16x64xi32>
    %4 = arith.extui %3 : vector<16x64xi1> to vector<16x64xi32>
    %5 = arith.sitofp %4 : vector<16x64xi32> to vector<16x64xf32>
    %c0_1 = arith.constant 0 : index
    %c0_2 = arith.constant 0 : index
    %6 = vector.load %arg3[%c0_1, %c0_2] : memref<64x128xf32, #tpu.memory_space<vmem>>, vector<64x128xf32>
    %cst = arith.constant dense<0.000000e+00> : vector<16x128xf32>
    %7 = tpu.matmul %5, %6, %cst {dimension_numbers = #tpu.dot_dimension_numbers<[1], [0], [0], [1], [0, 0, 1, 1], [], []>} : vector<16x64xf32>, vector<64x128xf32>, vector<16x128xf32> -> vector<16x128xf32>
    %c0_3 = arith.constant 0 : index
    %c0_4 = arith.constant 0 : index
    %8 = vector.load %arg4[%c0_3, %c0_4] : memref<16x128xf32, #tpu.memory_space<vmem>>, vector<16x128xf32>
    tpu.vector_store %arg4[%c0_3, %c0_4], %7 {strides = array<i32>} : memref<16x128xf32, #tpu.memory_space<vmem>>, vector<16x128xf32>,
    return
  }
  func.func @transform_0(%arg0: i32, %arg1: memref<1xi32, #tpu.memory_space<smem>>) -> (i32, i32) {
    %c0_i32 = arith.constant 0 : i32
    %c0_i32_0 = arith.constant 0 : i32
    return %arg0, %c0_i32 : i32, i32
  }
  func.func @transform_1(%arg0: i32, %arg1: memref<1xi32, #tpu.memory_space<smem>>) -> (i32, i32) {
    %c0_i32 = arith.constant 0 : i32
    %c0_i32_0 = arith.constant 0 : i32
    %c0_i32_1 = arith.constant 0 : i32
    return %c0_i32, %c0_i32_0 : i32, i32
  }
  func.func @transform_2(%arg0: i32, %arg1: memref<1xi32, #tpu.memory_space<smem>>) -> (i32, i32) {
    %c0_i32 = arith.constant 0 : i32
    %c0_i32_0 = arith.constant 0 : i32
    return %arg0, %c0_i32 : i32, i32
  }
}

</mosaic_0001>

<llo_original>
// kernel: tpu_custom_call.1
$region0: #{tpu_custom_call.1}
  #allocation0 [shape = 'u32[]', space=smem, size = 0x4, offset = 0x4, fixed_abs, tag = 'smem constant byte address 0x4 - core index']
  #allocation1 [shape = 'u32[144,128]{1,0:T(1,128)}', space=vmem, size = 0x12000, scoped, tag = 'internal scratch']
  #allocation2 [shape = 's32[1]{0}', space=sflag, size = 0x4, scoped, tag = 'scoped memory for tpu_custom_call.1']
  #allocation3 [shape = 's32[1]{0:T(128)S(6)}', space=smem, size = 0x200, scoped, tag = 'prefetched SMEM operand 0']
  %s0 = inlined_call_operand.<no memory space> [shape: s32[1], index: 0, kind: input, shape index: {}]
  %s1 = inlined_call_operand.vmem [shape: s32[16,1], index: 1, kind: input, shape index: {}]
  %s2 = inlined_call_operand.hbm [shape: f32[64,128], index: 2, kind: input, shape index: {}]
  %s3 = inlined_call_operand.hbm [shape: f32[16,128], index: 3, kind: output, shape index: {}]
  %s4 = sld [smem:[#allocation0]]
  $region22: #{tpu_custom_call.1} parent=0
    _
  %s6 = ssub.s32 1, %s4
  %s7 = scalar_select 0, %s6, %s4
  %8 = sst [smem:[#allocation3]] %s0
  $region1: #{tpu_custom_call.1} parent=0
    #allocation4 [shape = 'u8[32768]{0}', space=vmem, size = 0x8000, scoped, tag = 'input window, operand 2, single buffered']
    #allocation5 [shape = 's32[1]{0}', space=sflag, size = 0x4, scoped, tag = 'scoped memory for tpu_custom_call.1']
    #allocation6 [shape = 's32[1]{0}', space=sflag, size = 0x4, scoped, tag = 'scoped memory for tpu_custom_call.1']
    #allocation7 [shape = 'u8[8192]{0}', space=vmem, size = 0x2000, scoped, tag = 'output window, operand 0, single buffered']
    %9 = vsyncpa [#allocation5], 0
    %10 = vsyncpa [#allocation6], 0
    // Predicated region
    $region2: #{tpu_custom_call.1} parent=1 // pred_check
      _
    $region3: #{tpu_custom_call.1} parent=1 // pred_check_branch
      %12 = sbr.rel (0) target = $region5
    $region4: #{tpu_custom_call.1} parent=1 // pred_region
      _
    $region5: #{tpu_custom_call.1} parent=1 // pred_fallthru
      _
    // Predicated region
    $region6: #{tpu_custom_call.1} parent=1 // pred_check
      _
    $region7: #{tpu_custom_call.1} parent=1 // pred_check_branch
      %14 = sbr.rel (0) target = $region9
    $region8: #{tpu_custom_call.1} parent=1 // pred_region
      %s16 = ssub.s32 1024, 1024
      %17 = vsyncadd [#allocation5], %s16
      %s18 = sshll.u32 [#allocation4], 4
      %s19 = int_to_ptr.vmem [resolvable:$true] %s18
      %24 = dma.hbm_to_vmem [thread:$0]  %s2, 1024, %s19, [#allocation5], 128, 128, 8
    $region9: #{tpu_custom_call.1} parent=1 // pred_fallthru
      _
    // Predicated region
    $region10: #{tpu_custom_call.1} parent=1 // pred_check
      _
    $region11: #{tpu_custom_call.1} parent=1 // pred_check_branch
      %26 = sbr.rel (0) target = $region13
    $region12: #{tpu_custom_call.1} parent=1 // pred_region
      %27 = dma.done [#allocation5], 1024
    $region13: #{tpu_custom_call.1} parent=1 // pred_fallthru
      _
    %v28 = vld [vmem:[%s1] sm:$0xff]
    %v29 = vld [vmem:[%s1 + $0x8] sm:$0xff]
    %v30 = vlaneseq
    %v31 = vand.u32 %v30, 127
    %32 = vset.pattern.permute.xlu0 0
    %33 = vperm.xlu0 %32, %v28
    %v34 = vpop.permute.xlu0 %33
    %35 = vset.pattern.permute.xlu0 0
    %36 = vperm.xlu0 %35, %v29
    %v37 = vpop.permute.xlu0 %36
    %vm38 = vcmp.eq.s32.totalorder %v34, %v31
    %vm39 = vcmp.eq.s32.totalorder %v37, %v31
    %v40 = vsel %vm38, 1, 0
    %v41 = vsel %vm39, 1, 0
    %v42 = vcvt.s32.f32 %v40
    %v43 = vcvt.s32.f32 %v41
    %v44 = vld [vmem:[#allocation4] sm:$0xff]
    %v45 = vld [vmem:[#allocation4 + $0x8] sm:$0xff]
    %v46 = vld [vmem:[#allocation4 + $0x10] sm:$0xff]
    %v47 = vld [vmem:[#allocation4 + $0x18] sm:$0xff]
    %v48 = vld [vmem:[#allocation4 + $0x20] sm:$0xff]
    %v49 = vld [vmem:[#allocation4 + $0x28] sm:$0xff]
    %v50 = vld [vmem:[#allocation4 + $0x30] sm:$0xff]
    %v51 = vld [vmem:[#allocation4 + $0x38] sm:$0xff]
    %vm52 = vcmask 523264
    %v54 = vsel %vm52, %v42, 0
    %v57 = vsel %vm52, %v43, 0
    %59 = vmatprep.subr.mxu0 0.0
    %60 = vmatpush1.msra.mxu0 %v44
    %61 = vmatprep.subr.mxu0 0.0
    %62 = vmatpush1.msra.mxu0 %v45
    %63 = vmatprep.subr.mxu0 0.0
    %64 = vmatpush1.msra.mxu0 %v46
    %65 = vmatprep.subr.mxu0 0.0
    %66 = vmatpush1.msra.mxu0 %v47
    %67 = vmatprep.subr.mxu0 0.0
    %68 = vmatpush1.msra.mxu0 %v48
    %69 = vmatprep.subr.mxu0 0.0
    %70 = vmatpush1.msra.mxu0 %v49
    %71 = vmatprep.subr.mxu0 0.0
    %72 = vmatpush1.msra.mxu0 %v50
    %73 = vmatprep.subr.mxu0 0.0
    %74 = vmatpush1.msra.mxu0 %v51
    %75 = vmatprep.subr.mxu0 0.0
    %76 = vmatpush1.msra.mxu0 0.0
    %77 = vmatprep.subr.mxu0 0.0
    %78 = vmatpush1.msra.mxu0 0.0
    %79 = vmatprep.subr.mxu0 0.0
    %80 = vmatpush1.msra.mxu0 0.0
    %81 = vmatprep.subr.mxu0 0.0
    %82 = vmatpush1.msra.mxu0 0.0
    %83 = vmatprep.subr.mxu0 0.0
    %84 = vmatpush1.msra.mxu0 0.0
    %85 = vmatprep.subr.mxu0 0.0
    %86 = vmatpush1.msra.mxu0 0.0
    %87 = vmatprep.subr.mxu0 0.0
    %88 = vmatpush1.msra.mxu0 0.0
    %89 = vmatprep.subr.mxu0 0.0
    %90 = vmatpush1.msra.mxu0 0.0
    %91 = vmatprep.subr.mxu0 0.0
    %92 = vmatpush1.msra.mxu0 0.0
    %93 = vmatprep.subr.mxu0 0.0
    %94 = vmatpush1.msra.mxu0 0.0
    %95 = vmatprep.subr.mxu0 0.0
    %96 = vmatpush1.msra.mxu0 0.0
    %97 = vmatprep.subr.mxu0 0.0
    %98 = vmatpush1.msra.mxu0 0.0
    %99 = vmatprep.subr.mxu0 0.0
    %100 = vmatpush1.msra.mxu0 0.0
    %101 = vmatprep.subr.mxu0 0.0
    %102 = vmatpush1.msra.mxu0 0.0
    %103 = vmatprep.subr.mxu0 0.0
    %104 = vmatpush1.msra.mxu0 0.0
    %105 = vmatprep.subr.mxu0 0.0
    %106 = vmatpush1.msra.mxu0 0.0
    %107 = vmatprep.subr.mxu0 0.0
    %108 = vmatpush1.msra.mxu0 0.0
    %109 = vmatprep.subr.mxu0 0.0
    %110 = vmatpush1.msra.mxu0 0.0
    %111 = vmatprep.subr.mxu0 0.0
    %112 = vmatpush1.msra.mxu0 0.0
    %113 = vmatprep.subr.mxu0 0.0
    %114 = vmatpush1.msra.mxu0 0.0
    %115 = vmatprep.subr.mxu0 0.0
    %116 = vmatpush1.msra.mxu0 0.0
    %117 = vmatprep.subr.mxu0 0.0
    %118 = vmatpush1.msra.mxu0 0.0
    %119 = vmatprep.subr.mxu0 0.0
    %120 = vmatpush1.msra.mxu0 0.0
    %121 = vmatprep.subr.mxu0 0.0
    %122 = vmatpush1.msra.mxu0 0.0
    %123 = vmatprep.mubr.f32.mxu0 0.0
    %124 = vmatmul.mubr.f32.gmra.mrb[0].mxu0 %v54
    %v125 = vpop.f32.mrb[0].mxu0
    %v126 = vadd.f32 0.0, %v125
    %v127 = vpop.f32.mrb[0].mxu0
    %128 = vmatprep.mubr.f32.mxu0 0.0
    %129 = vmatmul.mubr.f32.gmra.mrb[0].mxu0 %v57
    %v130 = vpop.f32.mrb[0].mxu0
    %v131 = vadd.f32 0.0, %v130
    %v132 = vpop.f32.mrb[0].mxu0
    %133 = vdwg.mxu0
    %134 = vst [vmem:[#allocation7] sm:$0xff] %v126
    %135 = vst [vmem:[#allocation7 + $0x8] sm:$0xff] %v131
    // Predicated region
    $region14: #{tpu_custom_call.1} parent=1 // pred_check
      _
    $region15: #{tpu_custom_call.1} parent=1 // pred_check_branch
      %137 = sbr.rel (0) target = $region17
    $region16: #{tpu_custom_call.1} parent=1 // pred_region
      %s139 = ssub.s32 256, 256
      %140 = vsyncadd [#allocation6], %s139
      %s141 = sshll.u32 [#allocation7], 4
      %s142 = int_to_ptr.vmem [resolvable:$true] %s141
      %147 = dma.vmem_to_hbm [thread:$0]  %s142, 256, %s3, [#allocation6], 128, 128, 8
    $region17: #{tpu_custom_call.1} parent=1 // pred_fallthru
      _
    // Predicated region
    $region18: #{tpu_custom_call.1} parent=1 // pred_check
      _
    $region19: #{tpu_custom_call.1} parent=1 // pred_check_branch
      %149 = sbr.rel (0) target = $region21
    $region20: #{tpu_custom_call.1} parent=1 // pred_region
      %150 = dma.done [#allocation6], 256
    $region21: #{tpu_custom_call.1} parent=1 // pred_fallthru
      _
    %151 = vsyncpa [#allocation5], 1
    %152 = vsyncpa [#allocation6], 1

</llo_original>
